<compile_context>
chip_gen: v7x
topology: tpu7x:2x2x1
jax: 0.10.0
libtpu: 0.0.40
codegen_flags: <defaults>
</compile_context>

<pallas_src>
import jax
import jax.numpy as jnp
from jax.experimental import pallas as pl
from jax.experimental.pallas import tpu as pltpu


def _h_sigmoid_kernel(x_ref, o_ref):
    # Compute in f32 (exact for f32 inputs, higher precision for bf16, and
    # avoids the integer-constant-truncation pitfall), cast back on store.
    x = x_ref[...].astype(jnp.float32)
    y = jnp.clip(x + 3.0, 0.0, 6.0) * (1.0 / 6.0)
    o_ref[...] = y.astype(o_ref.dtype)


def h_sigmoid(x, *, target_block_bytes=2 * 1024 * 1024):
    """Elementwise hard-sigmoid (relu6(x+3)/6) on an NCHW (or any-shape) array."""
    orig_shape = x.shape
    orig_dtype = x.dtype
    n = int(x.size)
    itemsize = orig_dtype.itemsize
    # Min sublane multiple per dtype packing (f32:8, bf16:16, int8/fp8:32).
    sublane = {4: 8, 2: 16, 1: 32}.get(itemsize, 8)

    flat = x.reshape(-1)

    # Pick the widest lane count (multiple of 128) that divides numel exactly:
    # this makes the 2-D reshape a free, zero-copy view (no jnp.pad, no slice).
    cols = None
    for c in (1024, 512, 256, 128):
        if n % c == 0:
            cols = c
            break

    if cols is not None:
        rows = n // cols
        x2d = flat.reshape(rows, cols)
        needs_unpad = False
    else:
        # Rare ragged case (numel not a multiple of 128): pad to a full slab.
        cols = 1024
        rows = pl.cdiv(n, cols)
        x2d = jnp.pad(flat, (0, rows * cols - n)).reshape(rows, cols)
        needs_unpad = True

    # Block rows: ~target_block_bytes per block (amortizes the ~0.35us/step
    # overhead; 4 live double-buffered blocks stay under the v5e scoped-VMEM
    # default), rounded to a multiple of the sublane packing.  The last grid
    # step may be partial -- Pallas masks it, so no tile-collapse hazard and
    # no row padding is ever required.
    br = target_block_bytes // (cols * itemsize)
    br = max(sublane, (br // sublane) * sublane)
    if rows <= br:
        br = rows            # full-extent block: always a legal block shape
        grid = (1,)
    else:
        grid = (pl.cdiv(rows, br),)

    out2d = pl.pallas_call(
        _h_sigmoid_kernel,
        out_shape=jax.ShapeDtypeStruct((rows, cols), orig_dtype),
        grid_spec=pltpu.PrefetchScalarGridSpec(
            num_scalar_prefetch=0,
            grid=grid,
            in_specs=[pl.BlockSpec((br, cols), lambda i: (i, 0))],
            out_specs=pl.BlockSpec((br, cols), lambda i: (i, 0)),
        ),
        compiler_params=pltpu.CompilerParams(
            dimension_semantics=("parallel",)),
    )(x2d)

    if needs_unpad:
        return out2d.reshape(-1)[:n].reshape(orig_shape)
    return out2d.reshape(orig_shape)


def h_sigmoid_ref(x):
    return (jnp.clip(x.astype(jnp.float32) + 3.0, 0.0, 6.0) / 6.0).astype(x.dtype)


if __name__ == "__main__":
    key = jax.random.PRNGKey(0)

    # Primary case: NCHW f32, same convention as the PyTorch module.
    x = jax.random.normal(key, (2, 4, 16, 16), dtype=jnp.float32) * 4.0
    y = jax.block_until_ready(h_sigmoid(x))
    assert y.shape == x.shape and y.dtype == x.dtype
    assert jnp.max(jnp.abs(y - h_sigmoid_ref(x))) < 1e-6

    # Ragged numel (not a multiple of 128) -> exercises the fallback path.
    xr = jax.random.normal(jax.random.PRNGKey(1), (3, 5, 7, 11), jnp.float32) * 4.0
    yr = jax.block_until_ready(h_sigmoid(xr))
    assert yr.shape == xr.shape and yr.dtype == xr.dtype
    assert jnp.max(jnp.abs(yr - h_sigmoid_ref(xr))) < 1e-6

    # bf16 path (dtype-aware sublane handling).
    xb = (jax.random.normal(jax.random.PRNGKey(2), (2, 8, 32, 32), jnp.float32)
          * 4.0).astype(jnp.bfloat16)
    yb = jax.block_until_ready(h_sigmoid(xb))
    assert yb.shape == xb.shape and yb.dtype == xb.dtype
    assert jnp.max(jnp.abs(yb.astype(jnp.float32)
                           - h_sigmoid_ref(xb).astype(jnp.float32))) < 1e-2

    print("KERNEL_OK")
</pallas_src>

<mosaic_0001>
module attributes {stable_mosaic.version = 11 : i64} {
  func.func @_h_sigmoid_kernel(%arg0: i32, %arg1: memref<2x1024xf32, #tpu.memory_space<vmem>>, %arg2: memref<2x1024xf32, #tpu.memory_space<vmem>>) attributes {dimension_semantics = [#tpu.dimension_semantics<parallel>], iteration_bounds = array<i64: 1>, scalar_prefetch = 0 : i64, scratch_operands = 0 : i64, tpu.core_type = #tpu.core_type<tc>, window_params = [{transform_indices = @transform_0, window_bounds = array<i64: 2, 1024>}, {transform_indices = @transform_1, window_bounds = array<i64: 2, 1024>}]} {
    %c0 = arith.constant 0 : index
    %c0_0 = arith.constant 0 : index
    %0 = vector.load %arg1[%c0, %c0_0] : memref<2x1024xf32, #tpu.memory_space<vmem>>, vector<2x1024xf32>
    %cst = arith.constant 3.000000e+00 : f32
    %1 = vector.broadcast %cst : f32 to vector<2x1024xf32>
    %2 = arith.addf %0, %1 : vector<2x1024xf32>
    %cst_1 = arith.constant 0.000000e+00 : f32
    %cst_2 = arith.constant 6.000000e+00 : f32
    %3 = vector.broadcast %cst_1 : f32 to vector<2x1024xf32>
    %4 = arith.maximumf %3, %2 : vector<2x1024xf32>
    %5 = vector.broadcast %cst_2 : f32 to vector<2x1024xf32>
    %6 = arith.minimumf %5, %4 : vector<2x1024xf32>
    %cst_3 = arith.constant 0.166666672 : f32
    %7 = vector.broadcast %cst_3 : f32 to vector<2x1024xf32>
    %8 = arith.mulf %6, %7 : vector<2x1024xf32>
    %c0_4 = arith.constant 0 : index
    %c0_5 = arith.constant 0 : index
    %9 = vector.load %arg2[%c0_4, %c0_5] : memref<2x1024xf32, #tpu.memory_space<vmem>>, vector<2x1024xf32>
    tpu.vector_store %arg2[%c0_4, %c0_5], %8 {strides = array<i32>} : memref<2x1024xf32, #tpu.memory_space<vmem>>, vector<2x1024xf32>,
    return
  }
  func.func @transform_0(%arg0: i32) -> (i32, i32) {
    %c0_i32 = arith.constant 0 : i32
    %c0_i32_0 = arith.constant 0 : i32
    return %arg0, %c0_i32 : i32, i32
  }
  func.func @transform_1(%arg0: i32) -> (i32, i32) {
    %c0_i32 = arith.constant 0 : i32
    %c0_i32_0 = arith.constant 0 : i32
    return %arg0, %c0_i32 : i32, i32
  }
}

</mosaic_0001>

<llo_original>
// kernel: tpu_custom_call.1
$region0: #{tpu_custom_call.1}
  #allocation0 [shape = 'u32[]', space=smem, size = 0x4, offset = 0x4, fixed_abs, tag = 'smem constant byte address 0x4 - core index']
  #allocation1 [shape = 'u32[144,128]{1,0:T(1,128)}', space=vmem, size = 0x12000, scoped, tag = 'internal scratch']
  %s0 = inlined_call_operand.hbm [shape: f32[2,1024], index: 0, kind: input, shape index: {}]
  %s1 = inlined_call_operand.hbm [shape: f32[2,1024], index: 1, kind: output, shape index: {}]
  %s2 = sld [smem:[#allocation0]]
  $region18: #{tpu_custom_call.1} parent=0
    _
  %s4 = ssub.s32 1, %s2
  %s5 = scalar_select 0, %s4, %s2
  $region1: #{tpu_custom_call.1} parent=0
    #allocation2 [shape = 'u8[8192]{0}', space=vmem, size = 0x2000, scoped, tag = 'input window, operand 0, single buffered']
    #allocation3 [shape = 's32[1]{0}', space=sflag, size = 0x4, scoped, tag = 'scoped memory for tpu_custom_call.1']
    #allocation4 [shape = 's32[1]{0}', space=sflag, size = 0x4, scoped, tag = 'scoped memory for tpu_custom_call.1']
    #allocation5 [shape = 'u8[8192]{0}', space=vmem, size = 0x2000, scoped, tag = 'output window, operand 0, single buffered']
    %6 = vsyncpa [#allocation3], 0
    %7 = vsyncpa [#allocation4], 0
    // Predicated region
    $region2: #{tpu_custom_call.1} parent=1 // pred_check
      _
    $region3: #{tpu_custom_call.1} parent=1 // pred_check_branch
      %9 = sbr.rel (0) target = $region5
    $region4: #{tpu_custom_call.1} parent=1 // pred_region
      %s11 = ssub.s32 256, 256
      %12 = vsyncadd [#allocation3], %s11
      %s14 = sshll.u32 [#allocation2], 4
      %s15 = int_to_ptr.vmem [resolvable:$true] %s14
      %17 = dma.hbm_to_vmem [thread:$0]  %s0, 256, %s15, [#allocation3]
    $region5: #{tpu_custom_call.1} parent=1 // pred_fallthru
      _
    // Predicated region
    $region6: #{tpu_custom_call.1} parent=1 // pred_check
      _
    $region7: #{tpu_custom_call.1} parent=1 // pred_check_branch
      %19 = sbr.rel (0) target = $region9
    $region8: #{tpu_custom_call.1} parent=1 // pred_region
      %20 = dma.done [#allocation3], 256
    $region9: #{tpu_custom_call.1} parent=1 // pred_fallthru
      _
    %v21 = vld [vmem:[#allocation2] sm:$0xff]
    %v22 = vld [vmem:[#allocation2 + $0x8] sm:$0xff]
    %v23 = vadd.f32 %v21, 3.0
    %v24 = vadd.f32 %v22, 3.0
    %v25 = vmax.f32 %v23, 0.0
    %v26 = vmax.f32 %v24, 0.0
    %v27 = vmin.f32 %v25, 6.0
    %v28 = vmin.f32 %v26, 6.0
    %v29 = vmul.f32 %v27, 0.16666667
    %v30 = vmul.f32 %v28, 0.16666667
    %31 = vst [vmem:[#allocation5] sm:$0xff] %v29
    %32 = vst [vmem:[#allocation5 + $0x8] sm:$0xff] %v30
    // Predicated region
    $region10: #{tpu_custom_call.1} parent=1 // pred_check
      _
    $region11: #{tpu_custom_call.1} parent=1 // pred_check_branch
      %34 = sbr.rel (0) target = $region13
    $region12: #{tpu_custom_call.1} parent=1 // pred_region
      %s36 = ssub.s32 256, 256
      %37 = vsyncadd [#allocation4], %s36
      %s39 = sshll.u32 [#allocation5], 4
      %s40 = int_to_ptr.vmem [resolvable:$true] %s39
      %42 = dma.vmem_to_hbm [thread:$0]  %s40, 256, %s1, [#allocation4]
    $region13: #{tpu_custom_call.1} parent=1 // pred_fallthru
      _
    // Predicated region
    $region14: #{tpu_custom_call.1} parent=1 // pred_check
      _
    $region15: #{tpu_custom_call.1} parent=1 // pred_check_branch
      %44 = sbr.rel (0) target = $region17
    $region16: #{tpu_custom_call.1} parent=1 // pred_region
      %45 = dma.done [#allocation4], 256
    $region17: #{tpu_custom_call.1} parent=1 // pred_fallthru
      _
    %46 = vsyncpa [#allocation3], 1
    %47 = vsyncpa [#allocation4], 1

</llo_original>
